<compile_context>
chip_gen: v5e
topology: v5e:2x2
jax: 0.10.0
libtpu: 0.0.40
codegen_flags: <defaults>
</compile_context>

<pallas_src>
import jax
import jax.numpy as jnp
from jax import lax
from jax.experimental import pallas as pl
from jax.experimental.pallas import tpu as pltpu


def _round_up(a, b):
    return (a + b - 1) // b * b


def gp_mean_kernel(params_ref, x_ref, xt_ref, alpha_ref, out_ref):
    """One (N-tile, M-tile) grid step of the GP posterior mean.

    params_ref : SMEM f32[1]          -> [const_mean]
    x_ref      : VMEM f32[tN, D+2]    augmented test tile (resident across M)
    xt_ref     : VMEM f32[tM, D+2]    augmented training tile
    alpha_ref  : VMEM [1, tM]         outputscale * alpha (lane-dense row)
    out_ref    : VMEM f32[tN, 1]      accumulator / predictive-mean tile
    """
    mj = pl.program_id(1)

    @pl.when(mj == 0)
    def _():
        out_ref[...] = jnp.zeros_like(out_ref)

    # Augmented cross product == -0.5 * ||x - xt||^2 / ls^2  (always <= ~0),
    # so exp below can never overflow.  MXU, K = D+2 (tiny).
    arg = lax.dot_general(
        x_ref[...], xt_ref[...],
        dimension_numbers=(((1,), (1,)), ((), ())),
        preferred_element_type=jnp.float32,
    )                                                          # [tN, tM]

    # EUP exp (bf16 opt-in via alpha's dtype), then VPU broadcast-multiply
    # and row reduce with f32 accumulation.
    k = jnp.exp(arg.astype(alpha_ref.dtype))                    # [tN, tM]
    out_ref[...] += jnp.sum(k * alpha_ref[...], axis=-1, keepdims=True,
                            dtype=jnp.float32)

    @pl.when(mj == pl.num_programs(1) - 1)
    def _():
        out_ref[...] += params_ref[0]


def gp_predictive_mean(x, x_train, alpha, lengthscale, outputscale, const_mean,
                       tn=1024, tm=2048, exp_dtype=jnp.float32):
    """Pallas wrapper: GP posterior predictive mean, shape [N]."""
    n, d = x.shape
    m = x_train.shape[0]

    inv_ls = 1.0 / float(lengthscale)

    # Host-side prep (O(N*D) + O(M*D), once per call):
    #   scale coords by 1/ls and append [-0.5||.||^2, 1] / [1, -0.5||.||^2]
    #   so the in-kernel matmul yields the full (safe) RBF exponent.
    x32 = x.astype(jnp.float32) * inv_ls
    xt32 = x_train.astype(jnp.float32) * inv_ls
    x_aug = jnp.concatenate(
        [x32, -0.5 * jnp.sum(x32 * x32, axis=-1, keepdims=True),
         jnp.ones((n, 1), jnp.float32)], axis=-1)                       # [N, D+2]
    xt_aug = jnp.concatenate(
        [xt32, jnp.ones((m, 1), jnp.float32),
         -0.5 * jnp.sum(xt32 * xt32, axis=-1, keepdims=True)], axis=-1)  # [M, D+2]
    d_aug = d + 2

    # outputscale folded into alpha (no exp folding -> no underflow risk).
    alpha_row = (outputscale * alpha.reshape(-1)).reshape(1, m).astype(exp_dtype)

    # Tile sizes: sublane-multiple over N, lane-multiple over M; clamp to the
    # (padded) problem size.  Prefer >= 2 N tiles so the "parallel" N axis can
    # be split across v7x's two TensorCores (no-op on v5e/v6e).
    n8 = _round_up(n, 8)
    tn = int(min(tn, n8))
    if n8 // tn < 2 and n8 >= 16:
        tn = _round_up(-(-n8 // 2), 8)
    tm = int(min(tm, _round_up(m, 128)))

    n_pad = _round_up(n, tn)
    m_pad = _round_up(m, tm)

    x_p = jnp.pad(x_aug, ((0, n_pad - n), (0, 0)))
    xt_p = jnp.pad(xt_aug, ((0, m_pad - m), (0, 0)))
    a_p = jnp.pad(alpha_row, ((0, 0), (0, m_pad - m)))  # zero pad -> 0 contribution

    params = jnp.array([const_mean], jnp.float32)

    grid = (n_pad // tn, m_pad // tm)
    num_n_tiles = n_pad // tn

    cost = pl.CostEstimate(
        flops=n_pad * m_pad * (2 * d_aug + 2),
        transcendentals=n_pad * m_pad,
        bytes_accessed=4 * (n_pad * d_aug
                            + num_n_tiles * m_pad * (d_aug + 1)
                            + n_pad),
    )

    out = pl.pallas_call(
        gp_mean_kernel,
        out_shape=jax.ShapeDtypeStruct((n_pad, 1), jnp.float32),
        grid=grid,
        in_specs=[
            pl.BlockSpec(memory_space=pltpu.MemorySpace.SMEM),   # const_mean
            pl.BlockSpec((tn, d_aug), lambda i, j: (i, 0)),      # x tile, resident over M
            pl.BlockSpec((tm, d_aug), lambda i, j: (j, 0)),      # x_train tile
            pl.BlockSpec((1, tm), lambda i, j: (0, j)),          # alpha row (lane-dense)
        ],
        out_specs=pl.BlockSpec((tn, 1), lambda i, j: (i, 0)),    # resident accumulator
        compiler_params=pltpu.CompilerParams(
            dimension_semantics=("parallel", "arbitrary"),
            vmem_limit_bytes=48 * 1024 * 1024,
        ),
        cost_estimate=cost,
    )(params, x_p, xt_p, a_p)

    return out[:n, 0]


def rbf_kernel_matrix(a, b, lengthscale, outputscale):
    """Plain-JAX RBF kernel (training-set setup / reference only)."""
    d2 = (
        jnp.sum(a * a, axis=-1, keepdims=True)
        + jnp.sum(b * b, axis=-1)[None, :]
        - 2.0 * a @ b.T
    )
    d2 = jnp.maximum(d2, 0.0)
    return outputscale * jnp.exp(-0.5 * d2 / (lengthscale * lengthscale))


if __name__ == "__main__":
    # Deterministic synthetic GP "parameters" (no checkpoint load).
    N, M, D = 16, 32, 8          # test points, train points, feature dim
    lengthscale = 1.0
    outputscale = 1.0
    noise = 0.1

    key = jax.random.PRNGKey(0)
    k_x, k_xt, k_y = jax.random.split(key, 3)

    x = jax.random.normal(k_x, (N, D), dtype=jnp.float32)
    x_train = jax.random.normal(k_xt, (M, D), dtype=jnp.float32)
    y_train = (
        jnp.sin(jnp.sum(x_train, axis=-1))
        + 0.05 * jax.random.normal(k_y, (M,), dtype=jnp.float32)
    )
    const_mean = float(jnp.mean(y_train))

    # One-time setup (plain JAX): alpha = (K_train + noise I)^{-1} (y - const_mean)
    k_train = rbf_kernel_matrix(x_train, x_train, lengthscale, outputscale)
    k_train = k_train + noise * jnp.eye(M, dtype=jnp.float32)
    alpha = jnp.linalg.solve(k_train, (y_train - const_mean)[:, None])  # [M, 1]
    alpha = alpha.astype(jnp.float32)

    # Pallas kernel: posterior predictive mean (what MeanVarModelWrapper returns).
    mean = gp_predictive_mean(
        x, x_train, alpha, lengthscale, outputscale, const_mean
    )
    mean = jax.block_until_ready(mean)

    # Pure-JAX reference check.
    k_star_ref = rbf_kernel_matrix(x, x_train, lengthscale, outputscale)
    mean_ref = const_mean + (k_star_ref @ alpha).reshape(-1)
    assert mean.shape == (N,)
    assert jnp.allclose(mean, mean_ref, atol=1e-3, rtol=1e-3), (
        jnp.max(jnp.abs(mean - mean_ref)))

    print("KERNEL_OK")
</pallas_src>

<mosaic_0001>
module attributes {stable_mosaic.version = 11 : i64} {
  func.func @gp_mean_kernel(%arg0: i32, %arg1: i32, %arg2: memref<1xf32, #tpu.memory_space<smem>>, %arg3: memref<8x10xf32, #tpu.memory_space<vmem>>, %arg4: memref<128x10xf32, #tpu.memory_space<vmem>>, %arg5: memref<1x128xf32, #tpu.memory_space<vmem>>, %arg6: memref<8x1xf32, #tpu.memory_space<vmem>>) attributes {dimension_semantics = [#tpu.dimension_semantics<parallel>, #tpu.dimension_semantics<arbitrary>], iteration_bounds = array<i64: 2, 1>, scalar_prefetch = 0 : i64, scratch_operands = 0 : i64, tpu.core_type = #tpu.core_type<tc>, window_params = [{transform_indices = @transform_0, window_bounds = array<i64: 1>}, {transform_indices = @transform_1, window_bounds = array<i64: 8, 10>}, {transform_indices = @transform_2, window_bounds = array<i64: 128, 10>}, {transform_indices = @transform_3, window_bounds = array<i64: 1, 128>}, {transform_indices = @transform_4, window_bounds = array<i64: 8, 1>}]} {
    %c0_i32 = arith.constant 0 : i32
    %0 = arith.cmpi eq, %arg1, %c0_i32 : i32
    %1 = arith.extui %0 : i1 to i32
    %c0_i32_0 = arith.constant 0 : i32
    %2 = arith.cmpi ne, %1, %c0_i32_0 : i32
    scf.if %2 {
      %cst_13 = arith.constant 0.000000e+00 : f32
      %18 = vector.broadcast %cst_13 : f32 to vector<8x1xf32>
      %c0_14 = arith.constant 0 : index
      %c0_15 = arith.constant 0 : index
      %19 = vector.load %arg6[%c0_14, %c0_15] : memref<8x1xf32, #tpu.memory_space<vmem>>, vector<8x1xf32>
      tpu.vector_store %arg6[%c0_14, %c0_15], %18 {strides = array<i32>} : memref<8x1xf32, #tpu.memory_space<vmem>>, vector<8x1xf32>,
    } else {
    }
    %c0 = arith.constant 0 : index
    %c0_1 = arith.constant 0 : index
    %3 = vector.load %arg3[%c0, %c0_1] : memref<8x10xf32, #tpu.memory_space<vmem>>, vector<8x10xf32>
    %c0_2 = arith.constant 0 : index
    %c0_3 = arith.constant 0 : index
    %4 = vector.load %arg4[%c0_2, %c0_3] : memref<128x10xf32, #tpu.memory_space<vmem>>, vector<128x10xf32>
    %cst = arith.constant dense<0.000000e+00> : vector<8x128xf32>
    %5 = tpu.matmul %3, %4, %cst {dimension_numbers = #tpu.dot_dimension_numbers<[1], [1], [0], [0], [0, 0, 1, 0], [], []>} : vector<8x10xf32>, vector<128x10xf32>, vector<8x128xf32> -> vector<8x128xf32>
    %6 = math.exp %5 : vector<8x128xf32>
    %c0_4 = arith.constant 0 : index
    %c0_5 = arith.constant 0 : index
    %7 = vector.load %arg6[%c0_4, %c0_5] : memref<8x1xf32, #tpu.memory_space<vmem>>, vector<8x1xf32>
    %c0_6 = arith.constant 0 : index
    %c0_7 = arith.constant 0 : index
    %8 = vector.load %arg5[%c0_6, %c0_7] : memref<1x128xf32, #tpu.memory_space<vmem>>, vector<1x128xf32>
    %9 = vector.broadcast %8 : vector<1x128xf32> to vector<8x128xf32>
    %10 = arith.mulf %6, %9 : vector<8x128xf32>
    %cst_8 = arith.constant dense<0.000000e+00> : vector<8xf32>
    %11 = vector.multi_reduction <add>, %10, %cst_8 [1] : vector<8x128xf32> to vector<8xf32>
    %12 = vector.shape_cast %11 : vector<8xf32> to vector<8x1xf32>
    %13 = arith.addf %7, %12 : vector<8x1xf32>
    %c0_9 = arith.constant 0 : index
    %c0_10 = arith.constant 0 : index
    %14 = vector.load %arg6[%c0_9, %c0_10] : memref<8x1xf32, #tpu.memory_space<vmem>>, vector<8x1xf32>
    tpu.vector_store %arg6[%c0_9, %c0_10], %13 {strides = array<i32>} : memref<8x1xf32, #tpu.memory_space<vmem>>, vector<8x1xf32>,
    %c0_i32_11 = arith.constant 0 : i32
    %15 = arith.cmpi eq, %arg1, %c0_i32_11 : i32
    %16 = arith.extui %15 : i1 to i32
    %c0_i32_12 = arith.constant 0 : i32
    %17 = arith.cmpi ne, %16, %c0_i32_12 : i32
    scf.if %17 {
      %c0_13 = arith.constant 0 : index
      %c0_14 = arith.constant 0 : index
      %18 = vector.load %arg6[%c0_13, %c0_14] : memref<8x1xf32, #tpu.memory_space<vmem>>, vector<8x1xf32>
      %c0_15 = arith.constant 0 : index
      %19 = memref.load %arg2[%c0_15] : memref<1xf32, #tpu.memory_space<smem>>
      %20 = vector.broadcast %19 : f32 to vector<8x1xf32>
      %21 = arith.addf %18, %20 : vector<8x1xf32>
      %c0_16 = arith.constant 0 : index
      %c0_17 = arith.constant 0 : index
      %22 = vector.load %arg6[%c0_16, %c0_17] : memref<8x1xf32, #tpu.memory_space<vmem>>, vector<8x1xf32>
      tpu.vector_store %arg6[%c0_16, %c0_17], %21 {strides = array<i32>} : memref<8x1xf32, #tpu.memory_space<vmem>>, vector<8x1xf32>,
    } else {
    }
    return
  }
  func.func @transform_0(%arg0: i32, %arg1: i32) -> i32 {
    %c0_i32 = arith.constant 0 : i32
    %c0_i32_0 = arith.constant 0 : i32
    return %c0_i32 : i32
  }
  func.func @transform_1(%arg0: i32, %arg1: i32) -> (i32, i32) {
    %c0_i32 = arith.constant 0 : i32
    %c0_i32_0 = arith.constant 0 : i32
    return %arg0, %c0_i32 : i32, i32
  }
  func.func @transform_2(%arg0: i32, %arg1: i32) -> (i32, i32) {
    %c0_i32 = arith.constant 0 : i32
    %c0_i32_0 = arith.constant 0 : i32
    return %arg1, %c0_i32 : i32, i32
  }
  func.func @transform_3(%arg0: i32, %arg1: i32) -> (i32, i32) {
    %c0_i32 = arith.constant 0 : i32
    %c0_i32_0 = arith.constant 0 : i32
    return %c0_i32, %arg1 : i32, i32
  }
  func.func @transform_4(%arg0: i32, %arg1: i32) -> (i32, i32) {
    %c0_i32 = arith.constant 0 : i32
    %c0_i32_0 = arith.constant 0 : i32
    return %arg0, %c0_i32 : i32, i32
  }
}

</mosaic_0001>

<llo_original>
// kernel: tpu_custom_call.1
$region0: #{tpu_custom_call.1}
  #allocation0 [shape = 'u32[]', space=smem, size = 0x4, offset = 0x4, fixed_abs, tag = 'smem constant byte address 0x4 - core index']
  #allocation1 [shape = 'u32[72,128]{1,0:T(1,128)}', space=vmem, size = 0x9000, scoped, tag = 'internal scratch']
  #allocation2 [shape = 'f32[1]{0:T(128)S(6)}', space=smem, size = 0x200, scoped, tag = 'scoped memory for tpu_custom_call.1']
  %s0 = inlined_call_operand.<no memory space> [shape: f32[1], index: 0, kind: input, shape index: {}]
  %s1 = inlined_call_operand.vmem [shape: f32[16,10], index: 1, kind: input, shape index: {}]
  %s2 = inlined_call_operand.vmem [shape: f32[128,10], index: 2, kind: input, shape index: {}]
  %s3 = inlined_call_operand.vmem [shape: f32[1,128], index: 3, kind: input, shape index: {}]
  %s4 = inlined_call_operand.vmem [shape: f32[16,1], index: 4, kind: output, shape index: {}]
  %s5 = sld [smem:[#allocation0]]
  $region57: #{tpu_custom_call.1} parent=0
    _
  %s7 = ssub.s32 1, %s5
  %s8 = scalar_select 0, %s7, %s5
  %9 = sst [smem:[#allocation2]] %s0
  loop: start=0, step=1, limit=4
  $region2: #{tpu_custom_call.1} parent=0 // loop_pre_header
    _
  $region3: #{tpu_custom_call.1} parent=0 // loop_header
    %s11 = sphi 0, %s15
    %p12 = scmp.ge.s32.totalorder %s11, 4
    %s18 = sphi 0, %s30
    %s19 = sphi 0, %s26
    %s20 = sphi 0, %s18
    %s21 = sphi 0, %s19
    %s22 = sphi 0, %s20
    %s23 = sphi 0, %s21
    %s31 = sphi 0, %s31
    %s33 = sphi 0, %s31
    %s34 = sphi 0, %s33
    %s48 = sphi 0, %s34
    %s54 = sphi 0, %s56
    %s57 = sphi 0, %s54
    %s58 = sphi 0, %s57
    %s74 = sphi 0, %s58
    %s80 = sphi 0, %s82
    %s83 = sphi 0, %s80
    %s84 = sphi 0, %s83
    %s100 = sphi 0, %s84
    %s106 = sphi 0, %s108
    %s109 = sphi 0, %s106
    %s110 = sphi 0, %s109
    %s126 = sphi 0, %s110
    %s132 = sphi 0, %s134
    %s135 = sphi 0, %s132
    %s136 = sphi 0, %s135
    %s152 = sphi 0, %s136
  $region4: #{tpu_custom_call.1} parent=0 // loop_header_branch
    %14 = sbr.rel (%p12) target = $region8
  $region5: #{tpu_custom_call.1} parent=0 // loop_body
    %s16 = ssub.s32 %s11, 1
    %s17 = ssub.s32 %s11, 2
    %s24 = sadd.s32 1, %s19
    %p25 = scmp.ge.s32.totalorder %s24, 1
    %s26 = scalar_select %p25, 0, %s24
    %s27 = sadd.s32 1, %s18
    %s28 = scalar_select %p25, %s27, %s18
    %p29 = scmp.ge.s32.totalorder %s28, 2
    %s30 = scalar_select %p29, 0, %s28
    %s32 = sadd.s32 %s31, 1
    %p35 = scmp.eq.s32.totalorder %s11, 1
    %p36 = scmp.ne.s32.totalorder %s31, %s33
    %p37 = scmp.eq.s32.totalorder %s11, 0
    %p38 = por %p36, %p37
    %p39 = scmp.ne.s32.totalorder %s31, %s33
    %p40 = scmp.eq.s32.totalorder %s16, 1
    %p41 = por %p39, %p40
    %p42 = scmp.ne.s32.totalorder %s33, %s34
    %p43 = scmp.eq.s32.totalorder %s16, 0
    %p44 = por %p42, %p43
    %p45 = scmp.ne.s32.totalorder %s33, %s34
    %p46 = scmp.eq.s32.totalorder %s17, 1
    %p47 = por %p45, %p46
    %p49 = scmp.ne.s32.totalorder %s34, %s48
    %p50 = scmp.eq.s32.totalorder %s17, 0
    %p51 = por %p49, %p50
    %s52 = ssub.s32 %s18, %s30
    %p53 = scmp.eq.s32.totalorder %s52, 0
    %s55 = sadd.s32 %s54, 1
    %s56 = scalar_select %p53, %s54, %s55
    %p59 = pneg %p53
    %p60 = scmp.eq.s32.totalorder %s11, 1
    %p61 = por %p59, %p60
    %p62 = scmp.ne.s32.totalorder %s54, %s57
    %p63 = scmp.eq.s32.totalorder %s11, 0
    %p64 = por %p62, %p63
    %p65 = scmp.ne.s32.totalorder %s54, %s57
    %p66 = scmp.eq.s32.totalorder %s16, 1
    %p67 = por %p65, %p66
    %p68 = scmp.ne.s32.totalorder %s57, %s58
    %p69 = scmp.eq.s32.totalorder %s16, 0
    %p70 = por %p68, %p69
    %p71 = scmp.ne.s32.totalorder %s57, %s58
    %p72 = scmp.eq.s32.totalorder %s17, 1
    %p73 = por %p71, %p72
    %p75 = scmp.ne.s32.totalorder %s58, %s74
    %p76 = scmp.eq.s32.totalorder %s17, 0
    %p77 = por %p75, %p76
    %s78 = ssub.s32 %s19, %s26
    %p79 = scmp.eq.s32.totalorder %s78, 0
    %s81 = sadd.s32 %s80, 1
    %s82 = scalar_select %p79, %s80, %s81
    %p85 = pneg %p79
    %p86 = scmp.eq.s32.totalorder %s11, 1
    %p87 = por %p85, %p86
    %p88 = scmp.ne.s32.totalorder %s80, %s83
    %p89 = scmp.eq.s32.totalorder %s11, 0
    %p90 = por %p88, %p89
    %p91 = scmp.ne.s32.totalorder %s80, %s83
    %p92 = scmp.eq.s32.totalorder %s16, 1
    %p93 = por %p91, %p92
    %p94 = scmp.ne.s32.totalorder %s83, %s84
    %p95 = scmp.eq.s32.totalorder %s16, 0
    %p96 = por %p94, %p95
    %p97 = scmp.ne.s32.totalorder %s83, %s84
    %p98 = scmp.eq.s32.totalorder %s17, 1
    %p99 = por %p97, %p98
    %p101 = scmp.ne.s32.totalorder %s84, %s100
    %p102 = scmp.eq.s32.totalorder %s17, 0
    %p103 = por %p101, %p102
    %s104 = ssub.s32 %s19, %s26
    %p105 = scmp.eq.s32.totalorder %s104, 0
    %s107 = sadd.s32 %s106, 1
    %s108 = scalar_select %p105, %s106, %s107
    %p111 = pneg %p105
    %p112 = scmp.eq.s32.totalorder %s11, 1
    %p113 = por %p111, %p112
    %p114 = scmp.ne.s32.totalorder %s106, %s109
    %p115 = scmp.eq.s32.totalorder %s11, 0
    %p116 = por %p114, %p115
    %p117 = scmp.ne.s32.totalorder %s106, %s109
    %p118 = scmp.eq.s32.totalorder %s16, 1
    %p119 = por %p117, %p118
    %p120 = scmp.ne.s32.totalorder %s109, %s110
    %p121 = scmp.eq.s32.totalorder %s16, 0
    %p122 = por %p120, %p121
    %p123 = scmp.ne.s32.totalorder %s109, %s110
    %p124 = scmp.eq.s32.totalorder %s17, 1
    %p125 = por %p123, %p124
    %p127 = scmp.ne.s32.totalorder %s110, %s126
    %p128 = scmp.eq.s32.totalorder %s17, 0
    %p129 = por %p127, %p128
    %s130 = ssub.s32 %s18, %s30
    %p131 = scmp.eq.s32.totalorder %s130, 0
    %s133 = sadd.s32 %s132, 1
    %s134 = scalar_select %p131, %s132, %s133
    %p137 = pneg %p131
    %p138 = scmp.eq.s32.totalorder %s11, 1
    %p139 = por %p137, %p138
    %p140 = scmp.ne.s32.totalorder %s132, %s135
    %p141 = scmp.eq.s32.totalorder %s11, 0
    %p142 = por %p140, %p141
    %p143 = scmp.ne.s32.totalorder %s132, %s135
    %p144 = scmp.eq.s32.totalorder %s16, 1
    %p145 = por %p143, %p144
    %p146 = scmp.ne.s32.totalorder %s135, %s136
    %p147 = scmp.eq.s32.totalorder %s16, 0
    %p148 = por %p146, %p147
    %p149 = scmp.ne.s32.totalorder %s135, %s136
    %p150 = scmp.eq.s32.totalorder %s17, 1
    %p151 = por %p149, %p150
    %p153 = scmp.ne.s32.totalorder %s136, %s152
    %p154 = scmp.eq.s32.totalorder %s17, 0
    %p155 = por %p153, %p154
    %p156 = scmp.le.s32.totalorder 1, %s11
    %p157 = scmp.lt.s32.totalorder %s11, 3
    %p158 = pnand %p156, %p157
    %p159 = pneg %p158
    // Predicated region
    $region9: #{tpu_custom_call.1} parent=5 // pred_check
      _
    $region10: #{tpu_custom_call.1} parent=5 // pred_check_branch
      %161 = sbr.rel (%p158) target = $region12
    $region11: #{tpu_custom_call.1} parent=5 // pred_region
      %s162 = ssub.s32 %s11, 1
      // Predicated region
      $region13: #{tpu_custom_call.1} parent=11 // pred_check
        %p163 = pneg %p44
      $region14: #{tpu_custom_call.1} parent=11 // pred_check_branch
        %165 = sbr.rel (%p163) target = $region16
      $region15: #{tpu_custom_call.1} parent=11 // pred_region
        _
      $region16: #{tpu_custom_call.1} parent=11 // pred_fallthru
        _
      // Predicated region
      $region17: #{tpu_custom_call.1} parent=11 // pred_check
        %p166 = pneg %p96
      $region18: #{tpu_custom_call.1} parent=11 // pred_check_branch
        %168 = sbr.rel (%p166) target = $region20
      $region19: #{tpu_custom_call.1} parent=11 // pred_region
        %s169 = smul.u32 16, %s21
        %p170 = scmp.lt.s32.totalorder %s169, 15
        %s171 = scalar_select %p170, %s169, 15
        %s172 = smul.addr %s171, 8
        %s173 = scalar_lea.vmem %s2, %s172
        %s174 = smul.u32 16, %s21
      $region20: #{tpu_custom_call.1} parent=11 // pred_fallthru
        _
      // Predicated region
      $region21: #{tpu_custom_call.1} parent=11 // pred_check
        %p175 = pneg %p122
      $region22: #{tpu_custom_call.1} parent=11 // pred_check_branch
        %177 = sbr.rel (%p175) target = $region24
      $region23: #{tpu_custom_call.1} parent=11 // pred_region
        %p178 = scmp.lt.s32.totalorder %s21, 0
        %s179 = scalar_select %p178, %s21, 0
        %s180 = scalar_lea.vmem %s3, %s179
      $region24: #{tpu_custom_call.1} parent=11 // pred_fallthru
        _
    $region12: #{tpu_custom_call.1} parent=5 // pred_fallthru
      _
    %p181 = scmp.lt.s32.totalorder %s11, 2
    // Predicated region
    $region25: #{tpu_custom_call.1} parent=5 // pred_check
      %p182 = pneg %p181
    $region26: #{tpu_custom_call.1} parent=5 // pred_check_branch
      %184 = sbr.rel (%p182) target = $region28
    $region27: #{tpu_custom_call.1} parent=5 // pred_region
      // Predicated region
      $region29: #{tpu_custom_call.1} parent=27 // pred_check
        %p185 = pneg %p64
      $region30: #{tpu_custom_call.1} parent=27 // pred_check_branch
        %187 = sbr.rel (%p185) target = $region32
      $region31: #{tpu_custom_call.1} parent=27 // pred_region
        %p188 = scmp.lt.s32.totalorder %s18, 1
        %s189 = scalar_select %p188, %s18, 1
        %s190 = smul.addr %s189, 8
        %s191 = scalar_lea.vmem %s1, %s190
      $region32: #{tpu_custom_call.1} parent=27 // pred_fallthru
        _
    $region28: #{tpu_custom_call.1} parent=5 // pred_fallthru
      _
    %p192 = scmp.le.s32.totalorder 1, %s11
    %p193 = scmp.lt.s32.totalorder %s11, 3
    %p194 = pnand %p192, %p193
    %p195 = pneg %p194
    // Predicated region
    $region33: #{tpu_custom_call.1} parent=5 // pred_check
      _
    $region34: #{tpu_custom_call.1} parent=5 // pred_check_branch
      %197 = sbr.rel (%p194) target = $region36
    $region35: #{tpu_custom_call.1} parent=5 // pred_region
      %s198 = ssub.s32 %s11, 1
      %p199 = pneg %p44
      %p200 = pneg %p41
      %p201 = scmp.lt.s32.totalorder %s20, 1
      %s202 = scalar_select %p201, %s20, 1
      %s203 = smul.addr %s202, 8
      %s204 = scalar_lea.vmem %s1, %s203
      %p205 = pneg %p70
      %p206 = pneg %p67
      %s207 = smul.u32 16, %s21
      %p208 = scmp.lt.s32.totalorder %s207, 15
      %s209 = scalar_select %p208, %s207, 15
      %s210 = smul.addr %s209, 8
      %s211 = scalar_lea.vmem %s2, %s210
      %p212 = pneg %p96
      %p213 = pneg %p93
      %p214 = scmp.lt.s32.totalorder %s21, 0
      %s215 = scalar_select %p214, %s21, 0
      %s216 = scalar_lea.vmem %s3, %s215
      %p217 = pneg %p122
      %p218 = pneg %p119
      %p219 = pneg %p148
      %p220 = pneg %p145
      %p221 = scmp.lt.s32.totalorder %s20, 1
      %s222 = scalar_select %p221, %s20, 1
      %s223 = smul.addr %s222, 8
      %s224 = scalar_lea.vmem %s4, %s223
      %p225 = scmp.lt.s32.totalorder %s20, 1
      %s226 = scalar_select %p225, %s20, 1
      %s227 = smul.addr %s226, 8
      %s228 = scalar_lea.vmem %s1, %s227
      %s229 = smul.u32 16, %s21
      %p230 = scmp.lt.s32.totalorder %s229, 15
      %s231 = scalar_select %p230, %s229, 15
      %s232 = smul.addr %s231, 8
      %s233 = scalar_lea.vmem %s2, %s232
      %s234 = smul.u32 16, %s21
      %p235 = scmp.lt.s32.totalorder %s21, 0
      %s236 = scalar_select %p235, %s21, 0
      %s237 = scalar_lea.vmem %s3, %s236
      %p238 = scmp.lt.s32.totalorder %s20, 1
      %s239 = scalar_select %p238, %s20, 1
      %s240 = smul.addr %s239, 8
      %s241 = scalar_lea.vmem %s4, %s240
      %p242 = scmp.eq.s32.totalorder %s21, 0
      // Predicated region
      $region37: #{tpu_custom_call.1} parent=35 // pred_check
        %p243 = pneg %p242
      $region38: #{tpu_custom_call.1} parent=35 // pred_check_branch
        %245 = sbr.rel (%p243) target = $region40
      $region39: #{tpu_custom_call.1} parent=35 // pred_region
        %vm246 = vcmask 7168
        %247 = vst.msk [vmem:[%s241] sm:$0xff] %vm246, 0.0
      $region40: #{tpu_custom_call.1} parent=35 // pred_fallthru
        _
      %v248 = vld [vmem:[%s228] sm:$0xff]
      %v249 = vld [vmem:[%s233] sm:$0xff]
      %v250 = vld [vmem:[%s233 + $0x8] sm:$0xff]
      %v251 = vld [vmem:[%s233 + $0x10] sm:$0xff]
      %v252 = vld [vmem:[%s233 + $0x18] sm:$0xff]
      %v253 = vld [vmem:[%s233 + $0x20] sm:$0xff]
      %v254 = vld [vmem:[%s233 + $0x28] sm:$0xff]
      %v255 = vld [vmem:[%s233 + $0x30] sm:$0xff]
      %v256 = vld [vmem:[%s233 + $0x38] sm:$0xff]
      %v257 = vld [vmem:[%s233 + $0x40] sm:$0xff]
      %v258 = vld [vmem:[%s233 + $0x48] sm:$0xff]
      %v259 = vld [vmem:[%s233 + $0x50] sm:$0xff]
      %v260 = vld [vmem:[%s233 + $0x58] sm:$0xff]
      %v261 = vld [vmem:[%s233 + $0x60] sm:$0xff]
      %v262 = vld [vmem:[%s233 + $0x68] sm:$0xff]
      %v263 = vld [vmem:[%s233 + $0x70] sm:$0xff]
      %v264 = vld [vmem:[%s233 + $0x78] sm:$0xff]
      %vm265 = vcmask 80896
      %v267 = vsel %vm265, %v248, 0
      %v270 = vsel %vm265, %v249, 0
      %v273 = vsel %vm265, %v250, 0
      %v276 = vsel %vm265, %v251, 0
      %v279 = vsel %vm265, %v252, 0
      %v282 = vsel %vm265, %v253, 0
      %v285 = vsel %vm265, %v254, 0
      %v288 = vsel %vm265, %v255, 0
      %v291 = vsel %vm265, %v256, 0
      %v294 = vsel %vm265, %v257, 0
      %v297 = vsel %vm265, %v258, 0
      %v300 = vsel %vm265, %v259, 0
      %v303 = vsel %vm265, %v260, 0
      %v306 = vsel %vm265, %v261, 0
      %v309 = vsel %vm265, %v262, 0
      %v312 = vsel %vm265, %v263, 0
      %v315 = vsel %vm265, %v264, 0
      %317 = vmatpush.xpose.msra.mxu0 %v315
      %318 = vmatpush.xpose.msra.mxu0 %v312
      %319 = vmatpush.xpose.msra.mxu0 %v309
      %320 = vmatpush.xpose.msra.mxu0 %v306
      %321 = vmatpush.xpose.msra.mxu0 %v303
      %322 = vmatpush.xpose.msra.mxu0 %v300
      %323 = vmatpush.xpose.msra.mxu0 %v297
      %324 = vmatpush.xpose.msra.mxu0 %v294
      %325 = vmatpush.xpose.msra.mxu0 %v291
      %326 = vmatpush.xpose.msra.mxu0 %v288
      %327 = vmatpush.xpose.msra.mxu0 %v285
      %328 = vmatpush.xpose.msra.mxu0 %v282
      %329 = vmatpush.xpose.msra.mxu0 %v279
      %330 = vmatpush.xpose.msra.mxu0 %v276
      %331 = vmatpush.xpose.msra.mxu0 %v273
      %332 = vmatpush.xpose.msra.mxu0 %v270
      %333 = vmatmul.f32.gmra.mxu0 %v267
      %v334 = vpop.f32.mrf.mxu0
      %v335 = vadd.f32 0.0, %v334
      %336 = vdwg.mxu0
      %v337 = vmul.f32 %v335, 1.442695
      %v338 = vpow.pop %v337
      %v339 = vld [vmem:[%s241] sm:$0xff]
      %v340 = vld [vmem:[%s237] sm:$0x1]
      %v342 = vperm.slane %v340, 0
      %v344 = vmul.f32 %v338, %v342
      %345 = vadd.xlane.f32.xlu0 %v344
      %v346 = vpop.xlane.xlu0 %345
      %v347 = vadd.f32 %v339, %v346
      %vm348 = vcmask 7168
      %349 = vst.msk [vmem:[%s241] sm:$0xff] %vm348, %v347
      // Predicated region
      $region41: #{tpu_custom_call.1} parent=35 // pred_check
        %p350 = pneg %p242
      $region42: #{tpu_custom_call.1} parent=35 // pred_check_branch
        %352 = sbr.rel (%p350) target = $region44
      $region43: #{tpu_custom_call.1} parent=35 // pred_region
        %v353 = vld [vmem:[%s241] sm:$0xff]
        %s354 = sld [smem:[#allocation2]]
        %v355 = vstv %s354
        %v356 = vadd.f32 %v353, %v355
        %357 = vst.msk [vmem:[%s241] sm:$0xff] %vm348, %v356
      $region44: #{tpu_custom_call.1} parent=35 // pred_fallthru
        _
      %p358 = scmp.lt.s32.totalorder %s20, 1
      %s359 = scalar_select %p358, %s20, 1
      %s360 = smul.addr %s359, 8
      %s361 = scalar_lea.vmem %s4, %s360
      // Predicated region
      $region45: #{tpu_custom_call.1} parent=35 // pred_check
        %p362 = pneg %p145
      $region46: #{tpu_custom_call.1} parent=35 // pred_check_branch
        %364 = sbr.rel (%p362) target = $region48
      $region47: #{tpu_custom_call.1} parent=35 // pred_region
        _
      $region48: #{tpu_custom_call.1} parent=35 // pred_fallthru
        _
    $region36: #{tpu_custom_call.1} parent=5 // pred_fallthru
      _
    %p365 = scmp.le.s32.totalorder 2, %s11
    // Predicated region
    $region49: #{tpu_custom_call.1} parent=5 // pred_check
      %p366 = pneg %p365
    $region50: #{tpu_custom_call.1} parent=5 // pred_check_branch
      %368 = sbr.rel (%p366) target = $region52
    $region51: #{tpu_custom_call.1} parent=5 // pred_region
      %s369 = ssub.s32 %s11, 2
      // Predicated region
      $region53: #{tpu_custom_call.1} parent=51 // pred_check
        %p370 = pneg %p151
      $region54: #{tpu_custom_call.1} parent=51 // pred_check_branch
        %372 = sbr.rel (%p370) target = $region56
      $region55: #{tpu_custom_call.1} parent=51 // pred_region
        %p373 = scmp.lt.s32.totalorder %s22, 1
        %s374 = scalar_select %p373, %s22, 1
        %s375 = smul.addr %s374, 8
        %s376 = scalar_lea.vmem %s4, %s375
      $region56: #{tpu_custom_call.1} parent=51 // pred_fallthru
        _
    $region52: #{tpu_custom_call.1} parent=5 // pred_fallthru
      _
  $region6: #{tpu_custom_call.1} parent=0 // loop_footer
    %s15 = sadd.s32 1, %s11
  $region7: #{tpu_custom_call.1} parent=0 // loop_footer_branch
    %10 = sbr.rel target = $region3
  $region8: #{tpu_custom_call.1} parent=0 // loop_exit
    _

</llo_original>
